<compile_context>
chip_gen: v5e
topology: v5e:2x2
jax: 0.10.0
libtpu: 0.0.40
codegen_flags: <defaults>
</compile_context>

<pallas_src>
import jax
import jax.numpy as jnp
from jax.experimental import pallas as pl
from jax.experimental.pallas import tpu as pltpu

_SUBLANE = 8
_LANE = 128


def _ffn_kernel(x_ref, w1t_ref, w3t_ref, w2t_ref, o_ref, acc_ref):
    j = pl.program_id(1)

    @pl.when(j == 0)
    def _():
        acc_ref[...] = jnp.zeros_like(acc_ref)

    # bf16 operands for the MXU; f32 accumulation. SiLU gate stays in f32
    # (required on v5e — no bf16 VPU/EUP — and the EUP/VPU slots have slack).
    x = x_ref[...].astype(w1t_ref.dtype)                               # (tm, dim)
    g = jnp.dot(x, w1t_ref[...], preferred_element_type=jnp.float32)   # (tm, th)
    u = jnp.dot(x, w3t_ref[...], preferred_element_type=jnp.float32)   # (tm, th)
    h = (g * jax.nn.sigmoid(g)) * u                                    # f32 gate
    acc_ref[...] += jnp.dot(h.astype(w2t_ref.dtype), w2t_ref[...],
                            preferred_element_type=jnp.float32)        # (tm, dim)

    @pl.when(j == pl.num_programs(1) - 1)
    def _():
        o_ref[...] = acc_ref[...].astype(o_ref.dtype)


def prepare_ffn_weights(w1, w2, w3, compute_dtype=jnp.bfloat16):
    """One-time prep: torch-Linear (out,in) -> (in,out) layout, cast to MXU dtype.

    Call this at module init, NOT per forward call, so the transposes/casts do
    not add full-weight HBM traffic inside the forward pass.
    """
    w1t = jnp.asarray(w1).T.astype(compute_dtype)   # (dim, hidden)
    w3t = jnp.asarray(w3).T.astype(compute_dtype)   # (dim, hidden)
    w2t = jnp.asarray(w2).T.astype(compute_dtype)   # (hidden, dim)
    return w1t, w3t, w2t


def _chip_profile():
    """Returns (usable VMEM budget in bytes, row-tile cap) for this chip."""
    vmem_cap = 128 * 1024 * 1024
    try:
        vmem_cap = int(pltpu.get_tpu_info().vmem_capacity_bytes)
    except Exception:
        pass
    kind = ""
    try:
        kind = jax.devices()[0].device_kind.lower()
    except Exception:
        pass
    # ~8 MiB headroom for compiler-internal scratch, semaphores, etc.
    budget = max(vmem_cap - 8 * 1024 * 1024, 16 * 1024 * 1024)
    if "v5 lite" in kind or "v5e" in kind or "v5lite" in kind:
        tm_cap = 256     # v5e: ~compute-bound at tm=256; spend VMEM on th instead
    elif vmem_cap <= 64 * 1024 * 1024:
        tm_cap = 512     # v7x: 64 MiB VMEM -> spend it on tm (intensity), trade th down
    else:
        tm_cap = 1024    # v6e: weights re-streamed per row block -> big tm
    return budget, tm_cap


def _vmem_bytes(tm, th, dim, xb, wb, ob):
    """VMEM footprint estimate for one grid step (incl. double buffering)."""
    return (2 * tm * dim * xb            # x tile (double-buffered)
            + 2 * 2 * dim * th * wb      # w1t + w3t tiles (double-buffered)
            + 2 * th * dim * wb          # w2t tile (double-buffered)
            + tm * dim * 4               # f32 accumulator (scratch)
            + 2 * tm * dim * ob          # output tile (double-buffered)
            + 14 * tm * th)              # g, u, h (f32) + bf16 cast of h


def _tm_candidates(mp, cap):
    """Multiple-of-8 divisors of mp, <= cap, descending."""
    cands = []
    c = (min(cap, mp) // _SUBLANE) * _SUBLANE
    while c >= _SUBLANE:
        if mp % c == 0:
            cands.append(c)
        c -= _SUBLANE
    return cands or [mp]


def _th_candidates(hidden, cap):
    """Multiple-of-128 divisors of hidden, <= cap, descending."""
    cands = []
    c = (min(cap, hidden) // _LANE) * _LANE
    while c >= _LANE:
        if hidden % c == 0:
            cands.append(c)
        c -= _LANE
    return cands or [hidden]


def _select_tiles(mp, hidden, dim, xb, wb, ob, budget, tm_cap, th_cap=2048):
    tm_cands = _tm_candidates(mp, tm_cap)
    th_cands = _th_candidates(hidden, th_cap)
    for tm in tm_cands:                      # biggest row tile first (intensity)
        for th in th_cands:                  # then biggest hidden tile that fits
            if _vmem_bytes(tm, th, dim, xb, wb, ob) <= budget:
                return tm, th
    return tm_cands[-1], th_cands[-1]        # nothing fits: smallest tiles


def feed_forward_pallas(x, w1t, w3t, w2t, *, tm=None, th=None):
    """x: (..., dim). w1t, w3t: (dim, hidden); w2t: (hidden, dim) (prepared)."""
    orig_shape = x.shape
    dim = orig_shape[-1]
    hidden = w1t.shape[1]
    xm = x.reshape(-1, dim)
    m = xm.shape[0]

    assert dim % _LANE == 0, f"dim={dim} must be a multiple of {_LANE}"

    # Pad the token count up to a multiple of 8 so row tiles fill the sublanes
    # (single-token decode etc.); padded rows are sliced off afterwards.
    mp = max(_SUBLANE, ((m + _SUBLANE - 1) // _SUBLANE) * _SUBLANE)

    xb = jnp.dtype(xm.dtype).itemsize
    wb = jnp.dtype(w1t.dtype).itemsize
    ob = xb
    budget, tm_cap = _chip_profile()

    auto_tm, auto_th = _select_tiles(mp, hidden, dim, xb, wb, ob, budget, tm_cap)
    if tm is None:
        tm = auto_tm
    if th is None:
        th = auto_th

    # If a user-supplied tm doesn't tile mp, pad further.
    if mp % tm != 0:
        mp = ((mp + tm - 1) // tm) * tm

    assert mp % tm == 0, f"padded M={mp} must be divisible by tm={tm}"
    assert hidden % th == 0, f"hidden={hidden} must be divisible by th={th}"
    assert (tm % _SUBLANE == 0), f"tm={tm} must be a multiple of {_SUBLANE}"
    assert (th % _LANE == 0) or (th == hidden), \
        f"th={th} must be a multiple of {_LANE} or the full hidden dim"

    if mp != m:
        xm = jnp.pad(xm, ((0, mp - m), (0, 0)))

    needed = _vmem_bytes(tm, th, dim, xb, wb, ob)
    vmem_limit = int(min(max(needed * 5 // 4, 32 * 1024 * 1024), budget))
    vmem_limit = max(vmem_limit, needed)

    out = pl.pallas_call(
        _ffn_kernel,
        out_shape=jax.ShapeDtypeStruct((mp, dim), x.dtype),
        grid_spec=pltpu.PrefetchScalarGridSpec(
            num_scalar_prefetch=0,
            grid=(mp // tm, hidden // th),
            in_specs=[
                pl.BlockSpec((tm, dim), lambda i, j: (i, 0)),   # x row tile
                pl.BlockSpec((dim, th), lambda i, j: (0, j)),   # W1^T column tile
                pl.BlockSpec((dim, th), lambda i, j: (0, j)),   # W3^T column tile
                pl.BlockSpec((th, dim), lambda i, j: (j, 0)),   # W2^T row tile
            ],
            out_specs=pl.BlockSpec((tm, dim), lambda i, j: (i, 0)),
            scratch_shapes=[pltpu.VMEM((tm, dim), jnp.float32)],
        ),
        compiler_params=pltpu.CompilerParams(
            dimension_semantics=("parallel", "arbitrary"),
            vmem_limit_bytes=vmem_limit),
    )(xm, w1t, w3t, w2t)

    if mp != m:
        out = out[:m]
    return out.reshape(orig_shape)


def _llama_hidden_dim(dim, hidden_dim, multiple_of, ffn_dim_multiplier):
    hidden_dim = int(2 * hidden_dim / 3)
    if ffn_dim_multiplier is not None:
        hidden_dim = int(ffn_dim_multiplier * hidden_dim)
    hidden_dim = multiple_of * ((hidden_dim + multiple_of - 1) // multiple_of)
    return hidden_dim


if __name__ == "__main__":
    # Module config (small but tile-friendly).
    dim = 256
    hidden_dim_arg = 512
    multiple_of = 128
    ffn_dim_multiplier = None
    hidden = _llama_hidden_dim(dim, hidden_dim_arg, multiple_of, ffn_dim_multiplier)  # 384

    batch, seq = 2, 8
    key = jax.random.PRNGKey(0)
    kx, k1, k2, k3 = jax.random.split(key, 4)

    x = jax.random.normal(kx, (batch, seq, dim), dtype=jnp.float32)
    # torch.nn.Linear weight layout: (out_features, in_features)
    w1 = jax.random.normal(k1, (hidden, dim), dtype=jnp.float32) * (1.0 / dim ** 0.5)
    w2 = jax.random.normal(k2, (dim, hidden), dtype=jnp.float32) * (1.0 / hidden ** 0.5)
    w3 = jax.random.normal(k3, (hidden, dim), dtype=jnp.float32) * (1.0 / dim ** 0.5)

    # One-time weight preparation (transpose + bf16 cast), then forward.
    w1t, w3t, w2t = prepare_ffn_weights(w1, w2, w3, compute_dtype=jnp.bfloat16)
    y = feed_forward_pallas(x, w1t, w3t, w2t)
    y = jax.block_until_ready(y)

    # Pure-JAX reference mirroring the kernel's compute path
    # (bf16 matmul operands, f32 accumulation, SiLU gate in f32).
    xb16 = x.astype(jnp.bfloat16)
    g = jnp.dot(xb16, w1t, preferred_element_type=jnp.float32)
    u = jnp.dot(xb16, w3t, preferred_element_type=jnp.float32)
    h = (g * jax.nn.sigmoid(g)) * u
    ref = jnp.dot(h.astype(jnp.bfloat16), w2t, preferred_element_type=jnp.float32)

    assert y.shape == x.shape
    assert jnp.allclose(y, ref, atol=1e-2, rtol=1e-2), (
        f"mismatch vs reference, max abs diff = {jnp.max(jnp.abs(y - ref))}")

    print("KERNEL_OK")
</pallas_src>

<mosaic_0001>
module attributes {stable_mosaic.version = 11 : i64} {
  func.func @_ffn_kernel(%arg0: i32, %arg1: i32, %arg2: memref<16x256xf32, #tpu.memory_space<vmem>>, %arg3: memref<256x384xbf16, #tpu.memory_space<vmem>>, %arg4: memref<256x384xbf16, #tpu.memory_space<vmem>>, %arg5: memref<384x256xbf16, #tpu.memory_space<vmem>>, %arg6: memref<16x256xf32, #tpu.memory_space<vmem>>, %arg7: memref<16x256xf32, #tpu.memory_space<vmem>>) attributes {dimension_semantics = [#tpu.dimension_semantics<parallel>, #tpu.dimension_semantics<arbitrary>], iteration_bounds = array<i64: 1, 1>, scalar_prefetch = 0 : i64, scratch_operands = 1 : i64, tpu.core_type = #tpu.core_type<tc>, window_params = [{transform_indices = @transform_0, window_bounds = array<i64: 16, 256>}, {transform_indices = @transform_1, window_bounds = array<i64: 256, 384>}, {transform_indices = @transform_2, window_bounds = array<i64: 256, 384>}, {transform_indices = @transform_3, window_bounds = array<i64: 384, 256>}, {transform_indices = @transform_4, window_bounds = array<i64: 16, 256>}]} {
    %c0_i32 = arith.constant 0 : i32
    %0 = arith.cmpi eq, %arg1, %c0_i32 : i32
    %1 = arith.extui %0 : i1 to i32
    %c0_i32_0 = arith.constant 0 : i32
    %2 = arith.cmpi ne, %1, %c0_i32_0 : i32
    scf.if %2 {
      %cst_17 = arith.constant 0.000000e+00 : f32
      %25 = vector.broadcast %cst_17 : f32 to vector<16x256xf32>
      %c0_18 = arith.constant 0 : index
      %c0_19 = arith.constant 0 : index
      %26 = vector.load %arg7[%c0_18, %c0_19] : memref<16x256xf32, #tpu.memory_space<vmem>>, vector<16x256xf32>
      tpu.vector_store %arg7[%c0_18, %c0_19], %25 {strides = array<i32>} : memref<16x256xf32, #tpu.memory_space<vmem>>, vector<16x256xf32>,
    } else {
    }
    %c0 = arith.constant 0 : index
    %c0_1 = arith.constant 0 : index
    %3 = vector.load %arg2[%c0, %c0_1] : memref<16x256xf32, #tpu.memory_space<vmem>>, vector<16x256xf32>
    %4 = arith.truncf %3 : vector<16x256xf32> to vector<16x256xbf16>
    %c0_2 = arith.constant 0 : index
    %c0_3 = arith.constant 0 : index
    %5 = vector.load %arg3[%c0_2, %c0_3] : memref<256x384xbf16, #tpu.memory_space<vmem>>, vector<256x384xbf16>
    %cst = arith.constant dense<0.000000e+00> : vector<16x384xf32>
    %6 = tpu.matmul %4, %5, %cst {dimension_numbers = #tpu.dot_dimension_numbers<[1], [0], [0], [1], [0, 0, 1, 1], [], []>} : vector<16x256xbf16>, vector<256x384xbf16>, vector<16x384xf32> -> vector<16x384xf32>
    %c0_4 = arith.constant 0 : index
    %c0_5 = arith.constant 0 : index
    %7 = vector.load %arg4[%c0_4, %c0_5] : memref<256x384xbf16, #tpu.memory_space<vmem>>, vector<256x384xbf16>
    %cst_6 = arith.constant dense<0.000000e+00> : vector<16x384xf32>
    %8 = tpu.matmul %4, %7, %cst_6 {dimension_numbers = #tpu.dot_dimension_numbers<[1], [0], [0], [1], [0, 0, 1, 1], [], []>} : vector<16x256xbf16>, vector<256x384xbf16>, vector<16x384xf32> -> vector<16x384xf32>
    %9 = arith.negf %6 : vector<16x384xf32>
    %10 = math.exp %9 : vector<16x384xf32>
    %cst_7 = arith.constant 1.000000e+00 : f32
    %11 = vector.broadcast %cst_7 : f32 to vector<16x384xf32>
    %12 = arith.addf %11, %10 : vector<16x384xf32>
    %13 = arith.divf %11, %12 : vector<16x384xf32>
    %14 = arith.mulf %6, %13 : vector<16x384xf32>
    %15 = arith.mulf %14, %8 : vector<16x384xf32>
    %c0_8 = arith.constant 0 : index
    %c0_9 = arith.constant 0 : index
    %16 = vector.load %arg7[%c0_8, %c0_9] : memref<16x256xf32, #tpu.memory_space<vmem>>, vector<16x256xf32>
    %17 = arith.truncf %15 : vector<16x384xf32> to vector<16x384xbf16>
    %c0_10 = arith.constant 0 : index
    %c0_11 = arith.constant 0 : index
    %18 = vector.load %arg5[%c0_10, %c0_11] : memref<384x256xbf16, #tpu.memory_space<vmem>>, vector<384x256xbf16>
    %cst_12 = arith.constant dense<0.000000e+00> : vector<16x256xf32>
    %19 = tpu.matmul %17, %18, %cst_12 {dimension_numbers = #tpu.dot_dimension_numbers<[1], [0], [0], [1], [0, 0, 1, 1], [], []>} : vector<16x384xbf16>, vector<384x256xbf16>, vector<16x256xf32> -> vector<16x256xf32>
    %20 = arith.addf %16, %19 : vector<16x256xf32>
    %c0_13 = arith.constant 0 : index
    %c0_14 = arith.constant 0 : index
    %21 = vector.load %arg7[%c0_13, %c0_14] : memref<16x256xf32, #tpu.memory_space<vmem>>, vector<16x256xf32>
    tpu.vector_store %arg7[%c0_13, %c0_14], %20 {strides = array<i32>} : memref<16x256xf32, #tpu.memory_space<vmem>>, vector<16x256xf32>,
    %c0_i32_15 = arith.constant 0 : i32
    %22 = arith.cmpi eq, %arg1, %c0_i32_15 : i32
    %23 = arith.extui %22 : i1 to i32
    %c0_i32_16 = arith.constant 0 : i32
    %24 = arith.cmpi ne, %23, %c0_i32_16 : i32
    scf.if %24 {
      %c0_17 = arith.constant 0 : index
      %c0_18 = arith.constant 0 : index
      %25 = vector.load %arg7[%c0_17, %c0_18] : memref<16x256xf32, #tpu.memory_space<vmem>>, vector<16x256xf32>
      %c0_19 = arith.constant 0 : index
      %c0_20 = arith.constant 0 : index
      %26 = vector.load %arg6[%c0_19, %c0_20] : memref<16x256xf32, #tpu.memory_space<vmem>>, vector<16x256xf32>
      tpu.vector_store %arg6[%c0_19, %c0_20], %25 {strides = array<i32>} : memref<16x256xf32, #tpu.memory_space<vmem>>, vector<16x256xf32>,
    } else {
    }
    return
  }
  func.func @transform_0(%arg0: i32, %arg1: i32) -> (i32, i32) {
    %c0_i32 = arith.constant 0 : i32
    %c0_i32_0 = arith.constant 0 : i32
    return %arg0, %c0_i32 : i32, i32
  }
  func.func @transform_1(%arg0: i32, %arg1: i32) -> (i32, i32) {
    %c0_i32 = arith.constant 0 : i32
    %c0_i32_0 = arith.constant 0 : i32
    return %c0_i32, %arg1 : i32, i32
  }
  func.func @transform_2(%arg0: i32, %arg1: i32) -> (i32, i32) {
    %c0_i32 = arith.constant 0 : i32
    %c0_i32_0 = arith.constant 0 : i32
    return %c0_i32, %arg1 : i32, i32
  }
  func.func @transform_3(%arg0: i32, %arg1: i32) -> (i32, i32) {
    %c0_i32 = arith.constant 0 : i32
    %c0_i32_0 = arith.constant 0 : i32
    return %arg1, %c0_i32 : i32, i32
  }
  func.func @transform_4(%arg0: i32, %arg1: i32) -> (i32, i32) {
    %c0_i32 = arith.constant 0 : i32
    %c0_i32_0 = arith.constant 0 : i32
    return %arg0, %c0_i32 : i32, i32
  }
}

</mosaic_0001>

<llo_original>
// kernel: tpu_custom_call.1
$region0: #{tpu_custom_call.1}
  #allocation0 [shape = 'u32[]', space=smem, size = 0x4, offset = 0x4, fixed_abs, tag = 'smem constant byte address 0x4 - core index']
  #allocation1 [shape = 'u32[72,128]{1,0:T(1,128)}', space=vmem, size = 0x9000, scoped, tag = 'internal scratch']
  #allocation2 [shape = 'f32[16,256]{1,0:T(8,128)}', space=vmem, size = 0x4000, scoped, tag = 'scratch operand']
  %s0 = inlined_call_operand.hbm [shape: f32[16,256], index: 0, kind: input, shape index: {}]
  %s1 = inlined_call_operand.hbm [shape: bf16[256,384], index: 1, kind: input, shape index: {}]
  %s2 = inlined_call_operand.hbm [shape: bf16[256,384], index: 2, kind: input, shape index: {}]
  %s3 = inlined_call_operand.hbm [shape: bf16[384,256], index: 3, kind: input, shape index: {}]
  %s4 = inlined_call_operand.hbm [shape: f32[16,256], index: 4, kind: output, shape index: {}]
  %s5 = sld [smem:[#allocation0]]
  $region50: #{tpu_custom_call.1} parent=0
    _
  %s7 = ssub.s32 1, %s5
  %s8 = scalar_select 0, %s7, %s5
  $region1: #{tpu_custom_call.1} parent=0
    #allocation3 [shape = 'u8[16384]{0}', space=vmem, size = 0x4000, scoped, tag = 'input window, operand 0, single buffered']
    #allocation4 [shape = 's32[1]{0}', space=sflag, size = 0x4, scoped, tag = 'scoped memory for tpu_custom_call.1']
    #allocation5 [shape = 's32[1]{0}', space=sflag, size = 0x4, scoped, tag = 'scoped memory for tpu_custom_call.1']
    #allocation6 [shape = 'u8[196608]{0}', space=vmem, size = 0x30000, scoped, tag = 'input window, operand 1, single buffered']
    #allocation7 [shape = 's32[1]{0}', space=sflag, size = 0x4, scoped, tag = 'scoped memory for tpu_custom_call.1']
    #allocation8 [shape = 'u8[196608]{0}', space=vmem, size = 0x30000, scoped, tag = 'input window, operand 2, single buffered']
    #allocation9 [shape = 'u8[196608]{0}', space=vmem, size = 0x30000, scoped, tag = 'input window, operand 3, single buffered']
    #allocation10 [shape = 's32[1]{0}', space=sflag, size = 0x4, scoped, tag = 'scoped memory for tpu_custom_call.1']
    #allocation11 [shape = 'u8[16384]{0}', space=vmem, size = 0x4000, scoped, tag = 'output window, operand 0, single buffered']
    %9 = vsyncpa [#allocation4], 0
    %10 = vsyncpa [#allocation7], 0
    %11 = vsyncpa [#allocation10], 0
    %12 = vsyncpa [#allocation5], 0
    // Predicated region
    $region2: #{tpu_custom_call.1} parent=1 // pred_check
      _
    $region3: #{tpu_custom_call.1} parent=1 // pred_check_branch
      %14 = sbr.rel (0) target = $region5
    $region4: #{tpu_custom_call.1} parent=1 // pred_region
      %16 = vsyncadd [#allocation4], 0
      %s17 = sshll.u32 %s0, 4
      %s18 = int_to_ptr.hbm [resolvable:$true] %s17
      %s19 = sshll.u32 [#allocation3], 4
      %s20 = int_to_ptr.vmem [resolvable:$true] %s19
      %25 = dma.hbm_to_vmem [thread:$0]  %s18, 512, %s20, [#allocation4], 256, 256, 16
    $region5: #{tpu_custom_call.1} parent=1 // pred_fallthru
      _
    // Predicated region
    $region6: #{tpu_custom_call.1} parent=1 // pred_check
      _
    $region7: #{tpu_custom_call.1} parent=1 // pred_check_branch
      %27 = sbr.rel (0) target = $region9
    $region8: #{tpu_custom_call.1} parent=1 // pred_region
      %29 = vsyncadd [#allocation7], 0
      %s30 = sshll.u32 %s1, 4
      %s31 = int_to_ptr.hbm [resolvable:$true] %s30
      %s32 = sshll.u32 [#allocation6], 4
      %s33 = int_to_ptr.vmem [resolvable:$true] %s32
      %38 = dma.hbm_to_vmem [thread:$0]  %s31, 6144, %s33, [#allocation7], 192, 192, 12
    $region9: #{tpu_custom_call.1} parent=1 // pred_fallthru
      _
    // Predicated region
    $region10: #{tpu_custom_call.1} parent=1 // pred_check
      _
    $region11: #{tpu_custom_call.1} parent=1 // pred_check_branch
      %40 = sbr.rel (0) target = $region13
    $region12: #{tpu_custom_call.1} parent=1 // pred_region
      %42 = vsyncadd [#allocation7], 0
      %s43 = sshll.u32 %s2, 4
      %s44 = int_to_ptr.hbm [resolvable:$true] %s43
      %s45 = sshll.u32 [#allocation8], 4
      %s46 = int_to_ptr.vmem [resolvable:$true] %s45
      %51 = dma.hbm_to_vmem [thread:$0]  %s44, 6144, %s46, [#allocation7], 192, 192, 12
    $region13: #{tpu_custom_call.1} parent=1 // pred_fallthru
      _
    // Predicated region
    $region14: #{tpu_custom_call.1} parent=1 // pred_check
      _
    $region15: #{tpu_custom_call.1} parent=1 // pred_check_branch
      %53 = sbr.rel (0) target = $region17
    $region16: #{tpu_custom_call.1} parent=1 // pred_region
      %55 = vsyncadd [#allocation10], 0
      %s56 = sshll.u32 %s3, 4
      %s57 = int_to_ptr.hbm [resolvable:$true] %s56
      %s58 = sshll.u32 [#allocation9], 4
      %s59 = int_to_ptr.vmem [resolvable:$true] %s58
      %64 = dma.hbm_to_vmem [thread:$0]  %s57, 6144, %s59, [#allocation10], 128, 128, 8
    $region17: #{tpu_custom_call.1} parent=1 // pred_fallthru
      _
    // Predicated region
    $region18: #{tpu_custom_call.1} parent=1 // pred_check
      _
    $region19: #{tpu_custom_call.1} parent=1 // pred_check_branch
      %66 = sbr.rel (0) target = $region21
    $region20: #{tpu_custom_call.1} parent=1 // pred_region
      %68 = dma.done [#allocation4], 512
    $region21: #{tpu_custom_call.1} parent=1 // pred_fallthru
      _
    // Predicated region
    $region22: #{tpu_custom_call.1} parent=1 // pred_check
      _
    $region23: #{tpu_custom_call.1} parent=1 // pred_check_branch
      %70 = sbr.rel (0) target = $region25
    $region24: #{tpu_custom_call.1} parent=1 // pred_region
      %72 = dma.done [#allocation7], 6144
    $region25: #{tpu_custom_call.1} parent=1 // pred_fallthru
      _
    // Predicated region
    $region26: #{tpu_custom_call.1} parent=1 // pred_check
      _
    $region27: #{tpu_custom_call.1} parent=1 // pred_check_branch
      %74 = sbr.rel (0) target = $region29
    $region28: #{tpu_custom_call.1} parent=1 // pred_region
      %76 = dma.done [#allocation7], 6144
    $region29: #{tpu_custom_call.1} parent=1 // pred_fallthru
      _
    // Predicated region
    $region30: #{tpu_custom_call.1} parent=1 // pred_check
      _
    $region31: #{tpu_custom_call.1} parent=1 // pred_check_branch
      %78 = sbr.rel (0) target = $region33
    $region32: #{tpu_custom_call.1} parent=1 // pred_region
      %80 = dma.done [#allocation10], 6144
    $region33: #{tpu_custom_call.1} parent=1 // pred_fallthru
      _
    %p81 = scmp.eq.s32.totalorder 0, 0
    // Predicated region
    $region34: #{tpu_custom_call.1} parent=1 // pred_check
      %p82 = pneg %p81
    $region35: #{tpu_custom_call.1} parent=1 // pred_check_branch
      %84 = sbr.rel (%p82) target = $region37
    $region36: #{tpu_custom_call.1} parent=1 // pred_region
      %85 = vst [vmem:[#allocation2] sm:$0xff] 0.0
      %86 = vst [vmem:[#allocation2 + $0x8] sm:$0xff] 0.0
      %87 = vst [vmem:[#allocation2 + $0x10] sm:$0xff] 0.0
      %88 = vst [vmem:[#allocation2 + $0x18] sm:$0xff] 0.0
    $region37: #{tpu_custom_call.1} parent=1 // pred_fallthru
      _
    %v89 = vld [vmem:[#allocation3] sm:$0xff]
    %v90 = vld [vmem:[#allocation3 + $0x8] sm:$0xff]
    %v91 = vld [vmem:[#allocation3 + $0x10] sm:$0xff]
    %v92 = vld [vmem:[#allocation3 + $0x18] sm:$0xff]
    %v93 = vpack.c.bf16 %v91, %v89
    %v94 = vpack.c.bf16 %v92, %v90
    %v95 = vld [vmem:[#allocation6] sm:$0xff]
    %v96 = vld [vmem:[#allocation6 + $0x8] sm:$0xf]
    %v97 = vld [vmem:[#allocation6 + $0xc] sm:$0xff]
    %v98 = vld [vmem:[#allocation6 + $0x14] sm:$0xf]
    %v99 = vld [vmem:[#allocation6 + $0x18] sm:$0xff]
    %v100 = vld [vmem:[#allocation6 + $0x20] sm:$0xf]
    %v101 = vld [vmem:[#allocation6 + $0x24] sm:$0xff]
    %v102 = vld [vmem:[#allocation6 + $0x2c] sm:$0xf]
    %v103 = vld [vmem:[#allocation6 + $0x30] sm:$0xff]
    %v104 = vld [vmem:[#allocation6 + $0x38] sm:$0xf]
    %v105 = vld [vmem:[#allocation6 + $0x3c] sm:$0xff]
    %v106 = vld [vmem:[#allocation6 + $0x44] sm:$0xf]
    %v107 = vld [vmem:[#allocation6 + $0x48] sm:$0xff]
    %v108 = vld [vmem:[#allocation6 + $0x50] sm:$0xf]
    %v109 = vld [vmem:[#allocation6 + $0x54] sm:$0xff]
    %v110 = vld [vmem:[#allocation6 + $0x5c] sm:$0xf]
    %v111 = vld [vmem:[#allocation6 + $0x60] sm:$0xff]
    %v112 = vld [vmem:[#allocation6 + $0x68] sm:$0xf]
    %v113 = vld [vmem:[#allocation6 + $0x6c] sm:$0xff]
    %v114 = vld [vmem:[#allocation6 + $0x74] sm:$0xf]
    %v115 = vld [vmem:[#allocation6 + $0x78] sm:$0xff]
    %v116 = vld [vmem:[#allocation6 + $0x80] sm:$0xf]
    %v117 = vld [vmem:[#allocation6 + $0x84] sm:$0xff]
    %v118 = vld [vmem:[#allocation6 + $0x8c] sm:$0xf]
    %v119 = vld [vmem:[#allocation6 + $0x90] sm:$0xff]
    %v120 = vld [vmem:[#allocation6 + $0x98] sm:$0xf]
    %v121 = vld [vmem:[#allocation6 + $0x9c] sm:$0xff]
    %v122 = vld [vmem:[#allocation6 + $0xa4] sm:$0xf]
    %v123 = vld [vmem:[#allocation6 + $0xa8] sm:$0xff]
    %v124 = vld [vmem:[#allocation6 + $0xb0] sm:$0xf]
    %v125 = vld [vmem:[#allocation6 + $0xb4] sm:$0xff]
    %v126 = vld [vmem:[#allocation6 + $0xbc] sm:$0xf]
    %v127 = vld [vmem:[#allocation6 + $0xc0] sm:$0xff]
    %v128 = vld [vmem:[#allocation6 + $0xc8] sm:$0xf]
    %v129 = vld [vmem:[#allocation6 + $0xcc] sm:$0xff]
    %v130 = vld [vmem:[#allocation6 + $0xd4] sm:$0xf]
    %v131 = vld [vmem:[#allocation6 + $0xd8] sm:$0xff]
    %v132 = vld [vmem:[#allocation6 + $0xe0] sm:$0xf]
    %v133 = vld [vmem:[#allocation6 + $0xe4] sm:$0xff]
    %v134 = vld [vmem:[#allocation6 + $0xec] sm:$0xf]
    %v135 = vld [vmem:[#allocation6 + $0xf0] sm:$0xff]
    %v136 = vld [vmem:[#allocation6 + $0xf8] sm:$0xf]
    %v137 = vld [vmem:[#allocation6 + $0xfc] sm:$0xff]
    %v138 = vld [vmem:[#allocation6 + $0x104] sm:$0xf]
    %v139 = vld [vmem:[#allocation6 + $0x108] sm:$0xff]
    %v140 = vld [vmem:[#allocation6 + $0x110] sm:$0xf]
    %v141 = vld [vmem:[#allocation6 + $0x114] sm:$0xff]
    %v142 = vld [vmem:[#allocation6 + $0x11c] sm:$0xf]
    %v143 = vld [vmem:[#allocation6 + $0x120] sm:$0xff]
    %v144 = vld [vmem:[#allocation6 + $0x128] sm:$0xf]
    %v145 = vld [vmem:[#allocation6 + $0x12c] sm:$0xff]
    %v146 = vld [vmem:[#allocation6 + $0x134] sm:$0xf]
    %v147 = vld [vmem:[#allocation6 + $0x138] sm:$0xff]
    %v148 = vld [vmem:[#allocation6 + $0x140] sm:$0xf]
    %v149 = vld [vmem:[#allocation6 + $0x144] sm:$0xff]
    %v150 = vld [vmem:[#allocation6 + $0x14c] sm:$0xf]
    %v151 = vld [vmem:[#allocation6 + $0x150] sm:$0xff]
    %v152 = vld [vmem:[#allocation6 + $0x158] sm:$0xf]
    %v153 = vld [vmem:[#allocation6 + $0x15c] sm:$0xff]
    %v154 = vld [vmem:[#allocation6 + $0x164] sm:$0xf]
    %v155 = vld [vmem:[#allocation6 + $0x168] sm:$0xff]
    %v156 = vld [vmem:[#allocation6 + $0x170] sm:$0xf]
    %v157 = vld [vmem:[#allocation6 + $0x174] sm:$0xff]
    %v158 = vld [vmem:[#allocation6 + $0x17c] sm:$0xf]
    %v223 = vunpack.c.l.b16 %v95
    %v224 = vunpack.c.h.b16 %v95
    %v225 = vunpack.c.l.b16 %v96
    %v226 = vunpack.c.l.b16 %v97
    %v227 = vunpack.c.h.b16 %v97
    %v228 = vunpack.c.l.b16 %v98
    %v229 = vunpack.c.l.b16 %v99
    %v230 = vunpack.c.h.b16 %v99
    %v231 = vunpack.c.l.b16 %v100
    %v232 = vunpack.c.l.b16 %v101
    %v233 = vunpack.c.h.b16 %v101
    %v234 = vunpack.c.l.b16 %v102
    %v235 = vunpack.c.l.b16 %v103
    %v236 = vunpack.c.h.b16 %v103
    %v237 = vunpack.c.l.b16 %v104
    %v238 = vunpack.c.l.b16 %v105
    %v239 = vunpack.c.h.b16 %v105
    %v240 = vunpack.c.l.b16 %v106
    %v241 = vunpack.c.l.b16 %v107
    %v242 = vunpack.c.h.b16 %v107
    %v243 = vunpack.c.l.b16 %v108
    %v244 = vunpack.c.l.b16 %v109
    %v245 = vunpack.c.h.b16 %v109
    %v246 = vunpack.c.l.b16 %v110
    %v247 = vunpack.c.l.b16 %v111
    %v248 = vunpack.c.h.b16 %v111
    %v249 = vunpack.c.l.b16 %v112
    %v250 = vunpack.c.l.b16 %v113
    %v251 = vunpack.c.h.b16 %v113
    %v252 = vunpack.c.l.b16 %v114
    %v253 = vunpack.c.l.b16 %v115
    %v254 = vunpack.c.h.b16 %v115
    %v255 = vunpack.c.l.b16 %v116
    %v256 = vunpack.c.l.b16 %v117
    %v257 = vunpack.c.h.b16 %v117
    %v258 = vunpack.c.l.b16 %v118
    %v259 = vunpack.c.l.b16 %v119
    %v260 = vunpack.c.h.b16 %v119
    %v261 = vunpack.c.l.b16 %v120
    %v262 = vunpack.c.l.b16 %v121
    %v263 = vunpack.c.h.b16 %v121
    %v264 = vunpack.c.l.b16 %v122
    %v265 = vunpack.c.l.b16 %v123
    %v266 = vunpack.c.h.b16 %v123
    %v267 = vunpack.c.l.b16 %v124
    %v268 = vunpack.c.l.b16 %v125
    %v269 = vunpack.c.h.b16 %v125
    %v270 = vunpack.c.l.b16 %v126
    %v271 = vunpack.c.l.b16 %v127
    %v272 = vunpack.c.h.b16 %v127
    %v273 = vunpack.c.l.b16 %v128
    %v274 = vunpack.c.l.b16 %v129
    %v275 = vunpack.c.h.b16 %v129
    %v276 = vunpack.c.l.b16 %v130
    %v277 = vunpack.c.l.b16 %v131
    %v278 = vunpack.c.h.b16 %v131
    %v279 = vunpack.c.l.b16 %v132
    %v280 = vunpack.c.l.b16 %v133
    %v281 = vunpack.c.h.b16 %v133
    %v282 = vunpack.c.l.b16 %v134
    %v283 = vunpack.c.l.b16 %v135
    %v284 = vunpack.c.h.b16 %v135
    %v285 = vunpack.c.l.b16 %v136
    %v286 = vunpack.c.l.b16 %v137
    %v287 = vunpack.c.h.b16 %v137
    %v288 = vunpack.c.l.b16 %v138
    %v289 = vunpack.c.l.b16 %v139
    %v290 = vunpack.c.h.b16 %v139
    %v291 = vunpack.c.l.b16 %v140
    %v292 = vunpack.c.l.b16 %v141
    %v293 = vunpack.c.h.b16 %v141
    %v294 = vunpack.c.l.b16 %v142
    %v295 = vunpack.c.l.b16 %v143
    %v296 = vunpack.c.h.b16 %v143
    %v297 = vunpack.c.l.b16 %v144
    %v298 = vunpack.c.l.b16 %v145
    %v299 = vunpack.c.h.b16 %v145
    %v300 = vunpack.c.l.b16 %v146
    %v301 = vunpack.c.l.b16 %v147
    %v302 = vunpack.c.h.b16 %v147
    %v303 = vunpack.c.l.b16 %v148
    %v304 = vunpack.c.l.b16 %v149
    %v305 = vunpack.c.h.b16 %v149
    %v306 = vunpack.c.l.b16 %v150
    %v307 = vunpack.c.l.b16 %v151
    %v308 = vunpack.c.h.b16 %v151
    %v309 = vunpack.c.l.b16 %v152
    %v310 = vunpack.c.l.b16 %v153
    %v311 = vunpack.c.h.b16 %v153
    %v312 = vunpack.c.l.b16 %v154
    %v313 = vunpack.c.l.b16 %v155
    %v314 = vunpack.c.h.b16 %v155
    %v315 = vunpack.c.l.b16 %v156
    %v316 = vunpack.c.l.b16 %v157
    %v317 = vunpack.c.h.b16 %v157
    %v318 = vunpack.c.l.b16 %v158
    %v319 = vpack.c.b16 %v226, %v223
    %v320 = vpack.c.b16 %v227, %v224
    %v321 = vpack.c.b16 %v228, %v225
    %v322 = vpack.c.b16 %v232, %v229
    %v323 = vpack.c.b16 %v233, %v230
    %v324 = vpack.c.b16 %v234, %v231
    %v325 = vpack.c.b16 %v238, %v235
    %v326 = vpack.c.b16 %v239, %v236
    %v327 = vpack.c.b16 %v240, %v237
    %v328 = vpack.c.b16 %v244, %v241
    %v329 = vpack.c.b16 %v245, %v242
    %v330 = vpack.c.b16 %v246, %v243
    %v331 = vpack.c.b16 %v250, %v247
    %v332 = vpack.c.b16 %v251, %v248
    %v333 = vpack.c.b16 %v252, %v249
    %v334 = vpack.c.b16 %v256, %v253
    %v335 = vpack.c.b16 %v257, %v254
    %v336 = vpack.c.b16 %v258, %v255
    %v337 = vpack.c.b16 %v262, %v259
    %v338 = vpack.c.b16 %v263, %v260
    %v339 = vpack.c.b16 %v264, %v261
    %v340 = vpack.c.b16 %v268, %v265
    %v341 = vpack.c.b16 %v269, %v266
    %v342 = vpack.c.b16 %v270, %v267
    %v343 = vpack.c.b16 %v274, %v271
    %v344 = vpack.c.b16 %v275, %v272
    %v345 = vpack.c.b16 %v276, %v273
    %v346 = vpack.c.b16 %v280, %v277
    %v347 = vpack.c.b16 %v281, %v278
    %v348 = vpack.c.b16 %v282, %v279
    %v349 = vpack.c.b16 %v286, %v283
    %v350 = vpack.c.b16 %v287, %v284
    %v351 = vpack.c.b16 %v288, %v285
    %v352 = vpack.c.b16 %v292, %v289
    %v353 = vpack.c.b16 %v293, %v290
    %v354 = vpack.c.b16 %v294, %v291
    %v355 = vpack.c.b16 %v298, %v295
    %v356 = vpack.c.b16 %v299, %v296
    %v357 = vpack.c.b16 %v300, %v297
    %v358 = vpack.c.b16 %v304, %v301
    %v359 = vpack.c.b16 %v305, %v302
    %v360 = vpack.c.b16 %v306, %v303
    %v361 = vpack.c.b16 %v310, %v307
    %v362 = vpack.c.b16 %v311, %v308
    %v363 = vpack.c.b16 %v312, %v309
    %v364 = vpack.c.b16 %v316, %v313
    %v365 = vpack.c.b16 %v317, %v314
    %v366 = vpack.c.b16 %v318, %v315
    %415 = vmatpush.bf16.msra.mxu0 %v340
    %416 = vmatpush.bf16.msra.mxu0 %v337
    %417 = vmatpush.bf16.msra.mxu0 %v334
    %418 = vmatpush.bf16.msra.mxu0 %v331
    %419 = vmatpush.bf16.msra.mxu0 %v328
    %420 = vmatpush.bf16.msra.mxu0 %v325
    %421 = vmatpush.bf16.msra.mxu0 %v322
    %422 = vmatpush.bf16.msra.mxu0 %v319
    %423 = vmatmul.bf16.gmra.mxu0 %v93
    %v424 = vpop.f32.mrf.mxu0
    %v425 = vadd.f32 0.0, %v424
    %v426 = vpop.f32.mrf.mxu0
    %v427 = vadd.f32 0.0, %v426
    %428 = vdwg.mxu0
    %429 = vmatpush.bf16.msra.mxu0 %v364
    %430 = vmatpush.bf16.msra.mxu0 %v361
    %431 = vmatpush.bf16.msra.mxu0 %v358
    %432 = vmatpush.bf16.msra.mxu0 %v355
    %433 = vmatpush.bf16.msra.mxu0 %v352
    %434 = vmatpush.bf16.msra.mxu0 %v349
    %435 = vmatpush.bf16.msra.mxu0 %v346
    %436 = vmatpush.bf16.msra.mxu0 %v343
    %437 = vmatmul.bf16.gmra.mxu0 %v94
    %v438 = vpop.f32.mrf.mxu0
    %v439 = vadd.f32 %v425, %v438
    %v440 = vpop.f32.mrf.mxu0
    %v441 = vadd.f32 %v427, %v440
    %442 = vdwg.mxu0
    %443 = vmatpush.bf16.msra.mxu0 %v341
    %444 = vmatpush.bf16.msra.mxu0 %v338
    %445 = vmatpush.bf16.msra.mxu0 %v335
    %446 = vmatpush.bf16.msra.mxu0 %v332
    %447 = vmatpush.bf16.msra.mxu0 %v329
    %448 = vmatpush.bf16.msra.mxu0 %v326
    %449 = vmatpush.bf16.msra.mxu0 %v323
    %450 = vmatpush.bf16.msra.mxu0 %v320
    %451 = vmatmul.bf16.gmra.mxu0 %v93
    %v452 = vpop.f32.mrf.mxu0
    %v453 = vadd.f32 0.0, %v452
    %v454 = vpop.f32.mrf.mxu0
    %v455 = vadd.f32 0.0, %v454
    %456 = vdwg.mxu0
    %457 = vmatpush.bf16.msra.mxu0 %v365
    %458 = vmatpush.bf16.msra.mxu0 %v362
    %459 = vmatpush.bf16.msra.mxu0 %v359
    %460 = vmatpush.bf16.msra.mxu0 %v356
    %461 = vmatpush.bf16.msra.mxu0 %v353
    %462 = vmatpush.bf16.msra.mxu0 %v350
    %463 = vmatpush.bf16.msra.mxu0 %v347
    %464 = vmatpush.bf16.msra.mxu0 %v344
    %465 = vmatmul.bf16.gmra.mxu0 %v94
    %v466 = vpop.f32.mrf.mxu0
    %v467 = vadd.f32 %v453, %v466
    %v468 = vpop.f32.mrf.mxu0
    %v469 = vadd.f32 %v455, %v468
    %470 = vdwg.mxu0
    %471 = vmatpush.bf16.msra.mxu0 %v342
    %472 = vmatpush.bf16.msra.mxu0 %v339
    %473 = vmatpush.bf16.msra.mxu0 %v336
    %474 = vmatpush.bf16.msra.mxu0 %v333
    %475 = vmatpush.bf16.msra.mxu0 %v330
    %476 = vmatpush.bf16.msra.mxu0 %v327
    %477 = vmatpush.bf16.msra.mxu0 %v324
    %478 = vmatpush.bf16.msra.mxu0 %v321
    %479 = vmatmul.bf16.gmra.mxu0 %v93
    %v480 = vpop.f32.mrf.mxu0
    %v481 = vadd.f32 0.0, %v480
    %v482 = vpop.f32.mrf.mxu0
    %v483 = vadd.f32 0.0, %v482
    %484 = vdwg.mxu0
    %485 = vmatpush.bf16.msra.mxu0 %v366
    %486 = vmatpush.bf16.msra.mxu0 %v363
    %487 = vmatpush.bf16.msra.mxu0 %v360
    %488 = vmatpush.bf16.msra.mxu0 %v357
    %489 = vmatpush.bf16.msra.mxu0 %v354
    %490 = vmatpush.bf16.msra.mxu0 %v351
    %491 = vmatpush.bf16.msra.mxu0 %v348
    %492 = vmatpush.bf16.msra.mxu0 %v345
    %493 = vmatmul.bf16.gmra.mxu0 %v94
    %v494 = vpop.f32.mrf.mxu0
    %v495 = vadd.f32 %v481, %v494
    %v496 = vpop.f32.mrf.mxu0
    %v497 = vadd.f32 %v483, %v496
    %498 = vdwg.mxu0
    %v499 = vld [vmem:[#allocation8] sm:$0xff]
    %v500 = vld [vmem:[#allocation8 + $0x8] sm:$0xf]
    %v501 = vld [vmem:[#allocation8 + $0xc] sm:$0xff]
    %v502 = vld [vmem:[#allocation8 + $0x14] sm:$0xf]
    %v503 = vld [vmem:[#allocation8 + $0x18] sm:$0xff]
    %v504 = vld [vmem:[#allocation8 + $0x20] sm:$0xf]
    %v505 = vld [vmem:[#allocation8 + $0x24] sm:$0xff]
    %v506 = vld [vmem:[#allocation8 + $0x2c] sm:$0xf]
    %v507 = vld [vmem:[#allocation8 + $0x30] sm:$0xff]
    %v508 = vld [vmem:[#allocation8 + $0x38] sm:$0xf]
    %v509 = vld [vmem:[#allocation8 + $0x3c] sm:$0xff]
    %v510 = vld [vmem:[#allocation8 + $0x44] sm:$0xf]
    %v511 = vld [vmem:[#allocation8 + $0x48] sm:$0xff]
    %v512 = vld [vmem:[#allocation8 + $0x50] sm:$0xf]
    %v513 = vld [vmem:[#allocation8 + $0x54] sm:$0xff]
    %v514 = vld [vmem:[#allocation8 + $0x5c] sm:$0xf]
    %v515 = vld [vmem:[#allocation8 + $0x60] sm:$0xff]
    %v516 = vld [vmem:[#allocation8 + $0x68] sm:$0xf]
    %v517 = vld [vmem:[#allocation8 + $0x6c] sm:$0xff]
    %v518 = vld [vmem:[#allocation8 + $0x74] sm:$0xf]
    %v519 = vld [vmem:[#allocation8 + $0x78] sm:$0xff]
    %v520 = vld [vmem:[#allocation8 + $0x80] sm:$0xf]
    %v521 = vld [vmem:[#allocation8 + $0x84] sm:$0xff]
    %v522 = vld [vmem:[#allocation8 + $0x8c] sm:$0xf]
    %v523 = vld [vmem:[#allocation8 + $0x90] sm:$0xff]
    %v524 = vld [vmem:[#allocation8 + $0x98] sm:$0xf]
    %v525 = vld [vmem:[#allocation8 + $0x9c] sm:$0xff]
    %v526 = vld [vmem:[#allocation8 + $0xa4] sm:$0xf]
    %v527 = vld [vmem:[#allocation8 + $0xa8] sm:$0xff]
    %v528 = vld [vmem:[#allocation8 + $0xb0] sm:$0xf]
    %v529 = vld [vmem:[#allocation8 + $0xb4] sm:$0xff]
    %v530 = vld [vmem:[#allocation8 + $0xbc] sm:$0xf]
    %v531 = vld [vmem:[#allocation8 + $0xc0] sm:$0xff]
    %v532 = vld [vmem:[#allocation8 + $0xc8] sm:$0xf]
    %v533 = vld [vmem:[#allocation8 + $0xcc] sm:$0xff]
    %v534 = vld [vmem:[#allocation8 + $0xd4] sm:$0xf]
    %v535 = vld [vmem:[#allocation8 + $0xd8] sm:$0xff]
    %v536 = vld [vmem:[#allocation8 + $0xe0] sm:$0xf]
    %v537 = vld [vmem:[#allocation8 + $0xe4] sm:$0xff]
    %v538 = vld [vmem:[#allocation8 + $0xec] sm:$0xf]
    %v539 = vld [vmem:[#allocation8 + $0xf0] sm:$0xff]
    %v540 = vld [vmem:[#allocation8 + $0xf8] sm:$0xf]
    %v541 = vld [vmem:[#allocation8 + $0xfc] sm:$0xff]
    %v542 = vld [vmem:[#allocation8 + $0x104] sm:$0xf]
    %v543 = vld [vmem:[#allocation8 + $0x108] sm:$0xff]
    %v544 = vld [vmem:[#allocation8 + $0x110] sm:$0xf]
    %v545 = vld [vmem:[#allocation8 + $0x114] sm:$0xff]
    %v546 = vld [vmem:[#allocation8 + $0x11c] sm:$0xf]
    %v547 = vld [vmem:[#allocation8 + $0x120] sm:$0xff]
    %v548 = vld [vmem:[#allocation8 + $0x128] sm:$0xf]
    %v549 = vld [vmem:[#allocation8 + $0x12c] sm:$0xff]
    %v550 = vld [vmem:[#allocation8 + $0x134] sm:$0xf]
    %v551 = vld [vmem:[#allocation8 + $0x138] sm:$0xff]
    %v552 = vld [vmem:[#allocation8 + $0x140] sm:$0xf]
    %v553 = vld [vmem:[#allocation8 + $0x144] sm:$0xff]
    %v554 = vld [vmem:[#allocation8 + $0x14c] sm:$0xf]
    %v555 = vld [vmem:[#allocation8 + $0x150] sm:$0xff]
    %v556 = vld [vmem:[#allocation8 + $0x158] sm:$0xf]
    %v557 = vld [vmem:[#allocation8 + $0x15c] sm:$0xff]
    %v558 = vld [vmem:[#allocation8 + $0x164] sm:$0xf]
    %v559 = vld [vmem:[#allocation8 + $0x168] sm:$0xff]
    %v560 = vld [vmem:[#allocation8 + $0x170] sm:$0xf]
    %v561 = vld [vmem:[#allocation8 + $0x174] sm:$0xff]
    %v562 = vld [vmem:[#allocation8 + $0x17c] sm:$0xf]
    %v627 = vunpack.c.l.b16 %v499
    %v628 = vunpack.c.h.b16 %v499
    %v629 = vunpack.c.l.b16 %v500
    %v630 = vunpack.c.l.b16 %v501
    %v631 = vunpack.c.h.b16 %v501
    %v632 = vunpack.c.l.b16 %v502
    %v633 = vunpack.c.l.b16 %v503
    %v634 = vunpack.c.h.b16 %v503
    %v635 = vunpack.c.l.b16 %v504
    %v636 = vunpack.c.l.b16 %v505
    %v637 = vunpack.c.h.b16 %v505
    %v638 = vunpack.c.l.b16 %v506
    %v639 = vunpack.c.l.b16 %v507
    %v640 = vunpack.c.h.b16 %v507
    %v641 = vunpack.c.l.b16 %v508
    %v642 = vunpack.c.l.b16 %v509
    %v643 = vunpack.c.h.b16 %v509
    %v644 = vunpack.c.l.b16 %v510
    %v645 = vunpack.c.l.b16 %v511
    %v646 = vunpack.c.h.b16 %v511
    %v647 = vunpack.c.l.b16 %v512
    %v648 = vunpack.c.l.b16 %v513
    %v649 = vunpack.c.h.b16 %v513
    %v650 = vunpack.c.l.b16 %v514
    %v651 = vunpack.c.l.b16 %v515
    %v652 = vunpack.c.h.b16 %v515
    %v653 = vunpack.c.l.b16 %v516
    %v654 = vunpack.c.l.b16 %v517
    %v655 = vunpack.c.h.b16 %v517
    %v656 = vunpack.c.l.b16 %v518
    %v657 = vunpack.c.l.b16 %v519
    %v658 = vunpack.c.h.b16 %v519
    %v659 = vunpack.c.l.b16 %v520
    %v660 = vunpack.c.l.b16 %v521
    %v661 = vunpack.c.h.b16 %v521
    %v662 = vunpack.c.l.b16 %v522
    %v663 = vunpack.c.l.b16 %v523
    %v664 = vunpack.c.h.b16 %v523
    %v665 = vunpack.c.l.b16 %v524
    %v666 = vunpack.c.l.b16 %v525
    %v667 = vunpack.c.h.b16 %v525
    %v668 = vunpack.c.l.b16 %v526
    %v669 = vunpack.c.l.b16 %v527
    %v670 = vunpack.c.h.b16 %v527
    %v671 = vunpack.c.l.b16 %v528
    %v672 = vunpack.c.l.b16 %v529
    %v673 = vunpack.c.h.b16 %v529
    %v674 = vunpack.c.l.b16 %v530
    %v675 = vunpack.c.l.b16 %v531
    %v676 = vunpack.c.h.b16 %v531
    %v677 = vunpack.c.l.b16 %v532
    %v678 = vunpack.c.l.b16 %v533
    %v679 = vunpack.c.h.b16 %v533
    %v680 = vunpack.c.l.b16 %v534
    %v681 = vunpack.c.l.b16 %v535
    %v682 = vunpack.c.h.b16 %v535
    %v683 = vunpack.c.l.b16 %v536
    %v684 = vunpack.c.l.b16 %v537
    %v685 = vunpack.c.h.b16 %v537
    %v686 = vunpack.c.l.b16 %v538
    %v687 = vunpack.c.l.b16 %v539
    %v688 = vunpack.c.h.b16 %v539
    %v689 = vunpack.c.l.b16 %v540
    %v690 = vunpack.c.l.b16 %v541
    %v691 = vunpack.c.h.b16 %v541
    %v692 = vunpack.c.l.b16 %v542
    %v693 = vunpack.c.l.b16 %v543
    %v694 = vunpack.c.h.b16 %v543
    %v695 = vunpack.c.l.b16 %v544
    %v696 = vunpack.c.l.b16 %v545
    %v697 = vunpack.c.h.b16 %v545
    %v698 = vunpack.c.l.b16 %v546
    %v699 = vunpack.c.l.b16 %v547
    %v700 = vunpack.c.h.b16 %v547
    %v701 = vunpack.c.l.b16 %v548
    %v702 = vunpack.c.l.b16 %v549
    %v703 = vunpack.c.h.b16 %v549
    %v704 = vunpack.c.l.b16 %v550
    %v705 = vunpack.c.l.b16 %v551
    %v706 = vunpack.c.h.b16 %v551
    %v707 = vunpack.c.l.b16 %v552
    %v708 = vunpack.c.l.b16 %v553
    %v709 = vunpack.c.h.b16 %v553
    %v710 = vunpack.c.l.b16 %v554
    %v711 = vunpack.c.l.b16 %v555
    %v712 = vunpack.c.h.b16 %v555
    %v713 = vunpack.c.l.b16 %v556
    %v714 = vunpack.c.l.b16 %v557
    %v715 = vunpack.c.h.b16 %v557
    %v716 = vunpack.c.l.b16 %v558
    %v717 = vunpack.c.l.b16 %v559
    %v718 = vunpack.c.h.b16 %v559
    %v719 = vunpack.c.l.b16 %v560
    %v720 = vunpack.c.l.b16 %v561
    %v721 = vunpack.c.h.b16 %v561
    %v722 = vunpack.c.l.b16 %v562
    %v723 = vpack.c.b16 %v630, %v627
    %v724 = vpack.c.b16 %v631, %v628
    %v725 = vpack.c.b16 %v632, %v629
    %v726 = vpack.c.b16 %v636, %v633
    %v727 = vpack.c.b16 %v637, %v634
    %v728 = vpack.c.b16 %v638, %v635
    %v729 = vpack.c.b16 %v642, %v639
    %v730 = vpack.c.b16 %v643, %v640
    %v731 = vpack.c.b16 %v644, %v641
    %v732 = vpack.c.b16 %v648, %v645
    %v733 = vpack.c.b16 %v649, %v646
    %v734 = vpack.c.b16 %v650, %v647
    %v735 = vpack.c.b16 %v654, %v651
    %v736 = vpack.c.b16 %v655, %v652
    %v737 = vpack.c.b16 %v656, %v653
    %v738 = vpack.c.b16 %v660, %v657
    %v739 = vpack.c.b16 %v661, %v658
    %v740 = vpack.c.b16 %v662, %v659
    %v741 = vpack.c.b16 %v666, %v663
    %v742 = vpack.c.b16 %v667, %v664
    %v743 = vpack.c.b16 %v668, %v665
    %v744 = vpack.c.b16 %v672, %v669
    %v745 = vpack.c.b16 %v673, %v670
    %v746 = vpack.c.b16 %v674, %v671
    %v747 = vpack.c.b16 %v678, %v675
    %v748 = vpack.c.b16 %v679, %v676
    %v749 = vpack.c.b16 %v680, %v677
    %v750 = vpack.c.b16 %v684, %v681
    %v751 = vpack.c.b16 %v685, %v682
    %v752 = vpack.c.b16 %v686, %v683
    %v753 = vpack.c.b16 %v690, %v687
    %v754 = vpack.c.b16 %v691, %v688
    %v755 = vpack.c.b16 %v692, %v689
    %v756 = vpack.c.b16 %v696, %v693
    %v757 = vpack.c.b16 %v697, %v694
    %v758 = vpack.c.b16 %v698, %v695
    %v759 = vpack.c.b16 %v702, %v699
    %v760 = vpack.c.b16 %v703, %v700
    %v761 = vpack.c.b16 %v704, %v701
    %v762 = vpack.c.b16 %v708, %v705
    %v763 = vpack.c.b16 %v709, %v706
    %v764 = vpack.c.b16 %v710, %v707
    %v765 = vpack.c.b16 %v714, %v711
    %v766 = vpack.c.b16 %v715, %v712
    %v767 = vpack.c.b16 %v716, %v713
    %v768 = vpack.c.b16 %v720, %v717
    %v769 = vpack.c.b16 %v721, %v718
    %v770 = vpack.c.b16 %v722, %v719
    %819 = vmatpush.bf16.msra.mxu0 %v744
    %820 = vmatpush.bf16.msra.mxu0 %v741
    %821 = vmatpush.bf16.msra.mxu0 %v738
    %822 = vmatpush.bf16.msra.mxu0 %v735
    %823 = vmatpush.bf16.msra.mxu0 %v732
    %824 = vmatpush.bf16.msra.mxu0 %v729
    %825 = vmatpush.bf16.msra.mxu0 %v726
    %826 = vmatpush.bf16.msra.mxu0 %v723
    %827 = vmatmul.bf16.gmra.mxu0 %v93
    %v828 = vpop.f32.mrf.mxu0
    %v829 = vadd.f32 0.0, %v828
    %v830 = vpop.f32.mrf.mxu0
    %v831 = vadd.f32 0.0, %v830
    %832 = vdwg.mxu0
    %833 = vmatpush.bf16.msra.mxu0 %v768
    %834 = vmatpush.bf16.msra.mxu0 %v765
    %835 = vmatpush.bf16.msra.mxu0 %v762
    %836 = vmatpush.bf16.msra.mxu0 %v759
    %837 = vmatpush.bf16.msra.mxu0 %v756
    %838 = vmatpush.bf16.msra.mxu0 %v753
    %839 = vmatpush.bf16.msra.mxu0 %v750
    %840 = vmatpush.bf16.msra.mxu0 %v747
    %841 = vmatmul.bf16.gmra.mxu0 %v94
    %v842 = vpop.f32.mrf.mxu0
    %v843 = vadd.f32 %v829, %v842
    %v844 = vpop.f32.mrf.mxu0
    %v845 = vadd.f32 %v831, %v844
    %846 = vdwg.mxu0
    %847 = vmatpush.bf16.msra.mxu0 %v745
    %848 = vmatpush.bf16.msra.mxu0 %v742
    %849 = vmatpush.bf16.msra.mxu0 %v739
    %850 = vmatpush.bf16.msra.mxu0 %v736
    %851 = vmatpush.bf16.msra.mxu0 %v733
    %852 = vmatpush.bf16.msra.mxu0 %v730
    %853 = vmatpush.bf16.msra.mxu0 %v727
    %854 = vmatpush.bf16.msra.mxu0 %v724
    %855 = vmatmul.bf16.gmra.mxu0 %v93
    %v856 = vpop.f32.mrf.mxu0
    %v857 = vadd.f32 0.0, %v856
    %v858 = vpop.f32.mrf.mxu0
    %v859 = vadd.f32 0.0, %v858
    %860 = vdwg.mxu0
    %861 = vmatpush.bf16.msra.mxu0 %v769
    %862 = vmatpush.bf16.msra.mxu0 %v766
    %863 = vmatpush.bf16.msra.mxu0 %v763
    %864 = vmatpush.bf16.msra.mxu0 %v760
    %865 = vmatpush.bf16.msra.mxu0 %v757
    %866 = vmatpush.bf16.msra.mxu0 %v754
    %867 = vmatpush.bf16.msra.mxu0 %v751
    %868 = vmatpush.bf16.msra.mxu0 %v748
    %869 = vmatmul.bf16.gmra.mxu0 %v94
    %v870 = vpop.f32.mrf.mxu0
    %v871 = vadd.f32 %v857, %v870
    %v872 = vpop.f32.mrf.mxu0
    %v873 = vadd.f32 %v859, %v872
    %874 = vdwg.mxu0
    %875 = vmatpush.bf16.msra.mxu0 %v746
    %876 = vmatpush.bf16.msra.mxu0 %v743
    %877 = vmatpush.bf16.msra.mxu0 %v740
    %878 = vmatpush.bf16.msra.mxu0 %v737
    %879 = vmatpush.bf16.msra.mxu0 %v734
    %880 = vmatpush.bf16.msra.mxu0 %v731
    %881 = vmatpush.bf16.msra.mxu0 %v728
    %882 = vmatpush.bf16.msra.mxu0 %v725
    %883 = vmatmul.bf16.gmra.mxu0 %v93
    %v884 = vpop.f32.mrf.mxu0
    %v885 = vadd.f32 0.0, %v884
    %v886 = vpop.f32.mrf.mxu0
    %v887 = vadd.f32 0.0, %v886
    %888 = vdwg.mxu0
    %889 = vmatpush.bf16.msra.mxu0 %v770
    %890 = vmatpush.bf16.msra.mxu0 %v767
    %891 = vmatpush.bf16.msra.mxu0 %v764
    %892 = vmatpush.bf16.msra.mxu0 %v761
    %893 = vmatpush.bf16.msra.mxu0 %v758
    %894 = vmatpush.bf16.msra.mxu0 %v755
    %895 = vmatpush.bf16.msra.mxu0 %v752
    %896 = vmatpush.bf16.msra.mxu0 %v749
    %897 = vmatmul.bf16.gmra.mxu0 %v94
    %v898 = vpop.f32.mrf.mxu0
    %v899 = vadd.f32 %v885, %v898
    %v900 = vpop.f32.mrf.mxu0
    %v901 = vadd.f32 %v887, %v900
    %902 = vdwg.mxu0
    %v903 = vxor.u32 %v439, 2147483648
    %v904 = vxor.u32 %v467, 2147483648
    %v905 = vxor.u32 %v495, 2147483648
    %v906 = vxor.u32 %v441, 2147483648
    %v907 = vxor.u32 %v469, 2147483648
    %v908 = vxor.u32 %v497, 2147483648
    %v909 = vmul.f32 %v903, 1.442695
    %v910 = vpow.pop %v909
    %v911 = vmul.f32 %v904, 1.442695
    %v912 = vpow.pop %v911
    %v913 = vmul.f32 %v905, 1.442695
    %v914 = vpow.pop %v913
    %v915 = vmul.f32 %v906, 1.442695
    %v916 = vpow.pop %v915
    %v917 = vmul.f32 %v907, 1.442695
    %v918 = vpow.pop %v917
    %v919 = vmul.f32 %v908, 1.442695
    %v920 = vpow.pop %v919
    %v921 = vadd.f32 %v910, 1.0
    %v922 = vadd.f32 %v912, 1.0
    %v923 = vadd.f32 %v914, 1.0
    %v924 = vadd.f32 %v916, 1.0
    %v925 = vadd.f32 %v918, 1.0
    %v926 = vadd.f32 %v920, 1.0
    %v927 = vrcp.pop %v921
    %v928 = vmul.f32 %v921, %v927
    %v929 = vsub.f32 1.0, %v928
    %v930 = vmul.f32 %v927, %v929
    %v931 = vadd.f32 %v927, %v930
    %vm932 = vweird.f32 %v921
    %vm933 = vweird.f32 %v927
    %vm934 = vmor %vm932, %vm933
    %v935 = vsel %vm934, %v927, %v931
    %v936 = vand.u32 2147483647, %v921
    %vm937 = vcmp.eq.f32.partialorder %v936, 8.507059e+37
    %v938 = vand.u32 %v921, 2147483648
    %v939 = vor.u32 1.1754944e-38, %v938
    %v940 = vsel %vm937, %v939, %v935
    %v941 = vmul.f32 1.0, %v940
    %v942 = vrcp.pop %v922
    %v943 = vmul.f32 %v922, %v942
    %v944 = vsub.f32 1.0, %v943
    %v945 = vmul.f32 %v942, %v944
    %v946 = vadd.f32 %v942, %v945
    %vm947 = vweird.f32 %v922
    %vm948 = vweird.f32 %v942
    %vm949 = vmor %vm947, %vm948
    %v950 = vsel %vm949, %v942, %v946
    %v951 = vand.u32 2147483647, %v922
    %vm952 = vcmp.eq.f32.partialorder %v951, 8.507059e+37
    %v953 = vand.u32 %v922, 2147483648
    %v954 = vor.u32 1.1754944e-38, %v953
    %v955 = vsel %vm952, %v954, %v950
    %v956 = vmul.f32 1.0, %v955
    %v957 = vrcp.pop %v923
    %v958 = vmul.f32 %v923, %v957
    %v959 = vsub.f32 1.0, %v958
    %v960 = vmul.f32 %v957, %v959
    %v961 = vadd.f32 %v957, %v960
    %vm962 = vweird.f32 %v923
    %vm963 = vweird.f32 %v957
    %vm964 = vmor %vm962, %vm963
    %v965 = vsel %vm964, %v957, %v961
    %v966 = vand.u32 2147483647, %v923
    %vm967 = vcmp.eq.f32.partialorder %v966, 8.507059e+37
    %v968 = vand.u32 %v923, 2147483648
    %v969 = vor.u32 1.1754944e-38, %v968
    %v970 = vsel %vm967, %v969, %v965
    %v971 = vmul.f32 1.0, %v970
    %v972 = vrcp.pop %v924
    %v973 = vmul.f32 %v924, %v972
    %v974 = vsub.f32 1.0, %v973
    %v975 = vmul.f32 %v972, %v974
    %v976 = vadd.f32 %v972, %v975
    %vm977 = vweird.f32 %v924
    %vm978 = vweird.f32 %v972
    %vm979 = vmor %vm977, %vm978
    %v980 = vsel %vm979, %v972, %v976
    %v981 = vand.u32 2147483647, %v924
    %vm982 = vcmp.eq.f32.partialorder %v981, 8.507059e+37
    %v983 = vand.u32 %v924, 2147483648
    %v984 = vor.u32 1.1754944e-38, %v983
    %v985 = vsel %vm982, %v984, %v980
    %v986 = vmul.f32 1.0, %v985
    %v987 = vrcp.pop %v925
    %v988 = vmul.f32 %v925, %v987
    %v989 = vsub.f32 1.0, %v988
    %v990 = vmul.f32 %v987, %v989
    %v991 = vadd.f32 %v987, %v990
    %vm992 = vweird.f32 %v925
    %vm993 = vweird.f32 %v987
    %vm994 = vmor %vm992, %vm993
    %v995 = vsel %vm994, %v987, %v991
    %v996 = vand.u32 2147483647, %v925
    %vm997 = vcmp.eq.f32.partialorder %v996, 8.507059e+37
    %v998 = vand.u32 %v925, 2147483648
    %v999 = vor.u32 1.1754944e-38, %v998
    %v1000 = vsel %vm997, %v999, %v995
    %v1001 = vmul.f32 1.0, %v1000
    %v1002 = vrcp.pop %v926
    %v1003 = vmul.f32 %v926, %v1002
    %v1004 = vsub.f32 1.0, %v1003
    %v1005 = vmul.f32 %v1002, %v1004
    %v1006 = vadd.f32 %v1002, %v1005
    %vm1007 = vweird.f32 %v926
    %vm1008 = vweird.f32 %v1002
    %vm1009 = vmor %vm1007, %vm1008
    %v1010 = vsel %vm1009, %v1002, %v1006
    %v1011 = vand.u32 2147483647, %v926
    %vm1012 = vcmp.eq.f32.partialorder %v1011, 8.507059e+37
    %v1013 = vand.u32 %v926, 2147483648
    %v1014 = vor.u32 1.1754944e-38, %v1013
    %v1015 = vsel %vm1012, %v1014, %v1010
    %v1016 = vmul.f32 1.0, %v1015
    %v1017 = vmul.f32 %v439, %v941
    %v1018 = vmul.f32 %v467, %v956
    %v1019 = vmul.f32 %v495, %v971
    %v1020 = vmul.f32 %v441, %v986
    %v1021 = vmul.f32 %v469, %v1001
    %v1022 = vmul.f32 %v497, %v1016
    %v1023 = vmul.f32 %v1017, %v843
    %v1024 = vmul.f32 %v1018, %v871
    %v1025 = vmul.f32 %v1019, %v899
    %v1026 = vmul.f32 %v1020, %v845
    %v1027 = vmul.f32 %v1021, %v873
    %v1028 = vmul.f32 %v1022, %v901
    %v1029 = vld [vmem:[#allocation2] sm:$0xff]
    %v1030 = vld [vmem:[#allocation2 + $0x8] sm:$0xff]
    %v1031 = vld [vmem:[#allocation2 + $0x10] sm:$0xff]
    %v1032 = vld [vmem:[#allocation2 + $0x18] sm:$0xff]
    %v1033 = vpack.c.bf16 %v1026, %v1023
    %v1034 = vpack.c.bf16 %v1027, %v1024
    %v1035 = vpack.c.bf16 %v1028, %v1025
    %v1036 = vld [vmem:[#allocation9] sm:$0xff]
    %v1037 = vld [vmem:[#allocation9 + $0x8] sm:$0xff]
    %v1038 = vld [vmem:[#allocation9 + $0x10] sm:$0xff]
    %v1039 = vld [vmem:[#allocation9 + $0x18] sm:$0xff]
    %v1040 = vld [vmem:[#allocation9 + $0x20] sm:$0xff]
    %v1041 = vld [vmem:[#allocation9 + $0x28] sm:$0xff]
    %v1042 = vld [vmem:[#allocation9 + $0x30] sm:$0xff]
    %v1043 = vld [vmem:[#allocation9 + $0x38] sm:$0xff]
    %v1044 = vld [vmem:[#allocation9 + $0x40] sm:$0xff]
    %v1045 = vld [vmem:[#allocation9 + $0x48] sm:$0xff]
    %v1046 = vld [vmem:[#allocation9 + $0x50] sm:$0xff]
    %v1047 = vld [vmem:[#allocation9 + $0x58] sm:$0xff]
    %v1048 = vld [vmem:[#allocation9 + $0x60] sm:$0xff]
    %v1049 = vld [vmem:[#allocation9 + $0x68] sm:$0xff]
    %v1050 = vld [vmem:[#allocation9 + $0x70] sm:$0xff]
    %v1051 = vld [vmem:[#allocation9 + $0x78] sm:$0xff]
    %v1052 = vld [vmem:[#allocation9 + $0x80] sm:$0xff]
    %v1053 = vld [vmem:[#allocation9 + $0x88] sm:$0xff]
    %v1054 = vld [vmem:[#allocation9 + $0x90] sm:$0xff]
    %v1055 = vld [vmem:[#allocation9 + $0x98] sm:$0xff]
    %v1056 = vld [vmem:[#allocation9 + $0xa0] sm:$0xff]
    %v1057 = vld [vmem:[#allocation9 + $0xa8] sm:$0xff]
    %v1058 = vld [vmem:[#allocation9 + $0xb0] sm:$0xff]
    %v1059 = vld [vmem:[#allocation9 + $0xb8] sm:$0xff]
    %v1060 = vld [vmem:[#allocation9 + $0xc0] sm:$0xff]
    %v1061 = vld [vmem:[#allocation9 + $0xc8] sm:$0xff]
    %v1062 = vld [vmem:[#allocation9 + $0xd0] sm:$0xff]
    %v1063 = vld [vmem:[#allocation9 + $0xd8] sm:$0xff]
    %v1064 = vld [vmem:[#allocation9 + $0xe0] sm:$0xff]
    %v1065 = vld [vmem:[#allocation9 + $0xe8] sm:$0xff]
    %v1066 = vld [vmem:[#allocation9 + $0xf0] sm:$0xff]
    %v1067 = vld [vmem:[#allocation9 + $0xf8] sm:$0xff]
    %v1068 = vld [vmem:[#allocation9 + $0x100] sm:$0xff]
    %v1069 = vld [vmem:[#allocation9 + $0x108] sm:$0xff]
    %v1070 = vld [vmem:[#allocation9 + $0x110] sm:$0xff]
    %v1071 = vld [vmem:[#allocation9 + $0x118] sm:$0xff]
    %v1072 = vld [vmem:[#allocation9 + $0x120] sm:$0xff]
    %v1073 = vld [vmem:[#allocation9 + $0x128] sm:$0xff]
    %v1074 = vld [vmem:[#allocation9 + $0x130] sm:$0xff]
    %v1075 = vld [vmem:[#allocation9 + $0x138] sm:$0xff]
    %v1076 = vld [vmem:[#allocation9 + $0x140] sm:$0xff]
    %v1077 = vld [vmem:[#allocation9 + $0x148] sm:$0xff]
    %v1078 = vld [vmem:[#allocation9 + $0x150] sm:$0xff]
    %v1079 = vld [vmem:[#allocation9 + $0x158] sm:$0xff]
    %v1080 = vld [vmem:[#allocation9 + $0x160] sm:$0xff]
    %v1081 = vld [vmem:[#allocation9 + $0x168] sm:$0xff]
    %v1082 = vld [vmem:[#allocation9 + $0x170] sm:$0xff]
    %v1083 = vld [vmem:[#allocation9 + $0x178] sm:$0xff]
    %v1132 = vunpack.c.l.b16 %v1036
    %v1133 = vunpack.c.h.b16 %v1036
    %v1134 = vunpack.c.l.b16 %v1037
    %v1135 = vunpack.c.h.b16 %v1037
    %v1136 = vunpack.c.l.b16 %v1038
    %v1137 = vunpack.c.h.b16 %v1038
    %v1138 = vunpack.c.l.b16 %v1039
    %v1139 = vunpack.c.h.b16 %v1039
    %v1140 = vunpack.c.l.b16 %v1040
    %v1141 = vunpack.c.h.b16 %v1040
    %v1142 = vunpack.c.l.b16 %v1041
    %v1143 = vunpack.c.h.b16 %v1041
    %v1144 = vunpack.c.l.b16 %v1042
    %v1145 = vunpack.c.h.b16 %v1042
    %v1146 = vunpack.c.l.b16 %v1043
    %v1147 = vunpack.c.h.b16 %v1043
    %v1148 = vunpack.c.l.b16 %v1044
    %v1149 = vunpack.c.h.b16 %v1044
    %v1150 = vunpack.c.l.b16 %v1045
    %v1151 = vunpack.c.h.b16 %v1045
    %v1152 = vunpack.c.l.b16 %v1046
    %v1153 = vunpack.c.h.b16 %v1046
    %v1154 = vunpack.c.l.b16 %v1047
    %v1155 = vunpack.c.h.b16 %v1047
    %v1156 = vunpack.c.l.b16 %v1048
    %v1157 = vunpack.c.h.b16 %v1048
    %v1158 = vunpack.c.l.b16 %v1049
    %v1159 = vunpack.c.h.b16 %v1049
    %v1160 = vunpack.c.l.b16 %v1050
    %v1161 = vunpack.c.h.b16 %v1050
    %v1162 = vunpack.c.l.b16 %v1051
    %v1163 = vunpack.c.h.b16 %v1051
    %v1164 = vunpack.c.l.b16 %v1052
    %v1165 = vunpack.c.h.b16 %v1052
    %v1166 = vunpack.c.l.b16 %v1053
    %v1167 = vunpack.c.h.b16 %v1053
    %v1168 = vunpack.c.l.b16 %v1054
    %v1169 = vunpack.c.h.b16 %v1054
    %v1170 = vunpack.c.l.b16 %v1055
    %v1171 = vunpack.c.h.b16 %v1055
    %v1172 = vunpack.c.l.b16 %v1056
    %v1173 = vunpack.c.h.b16 %v1056
    %v1174 = vunpack.c.l.b16 %v1057
    %v1175 = vunpack.c.h.b16 %v1057
    %v1176 = vunpack.c.l.b16 %v1058
    %v1177 = vunpack.c.h.b16 %v1058
    %v1178 = vunpack.c.l.b16 %v1059
    %v1179 = vunpack.c.h.b16 %v1059
    %v1180 = vunpack.c.l.b16 %v1060
    %v1181 = vunpack.c.h.b16 %v1060
    %v1182 = vunpack.c.l.b16 %v1061
    %v1183 = vunpack.c.h.b16 %v1061
    %v1184 = vunpack.c.l.b16 %v1062
    %v1185 = vunpack.c.h.b16 %v1062
    %v1186 = vunpack.c.l.b16 %v1063
    %v1187 = vunpack.c.h.b16 %v1063
    %v1188 = vunpack.c.l.b16 %v1064
    %v1189 = vunpack.c.h.b16 %v1064
    %v1190 = vunpack.c.l.b16 %v1065
    %v1191 = vunpack.c.h.b16 %v1065
    %v1192 = vunpack.c.l.b16 %v1066
    %v1193 = vunpack.c.h.b16 %v1066
    %v1194 = vunpack.c.l.b16 %v1067
    %v1195 = vunpack.c.h.b16 %v1067
    %v1196 = vunpack.c.l.b16 %v1068
    %v1197 = vunpack.c.h.b16 %v1068
    %v1198 = vunpack.c.l.b16 %v1069
    %v1199 = vunpack.c.h.b16 %v1069
    %v1200 = vunpack.c.l.b16 %v1070
    %v1201 = vunpack.c.h.b16 %v1070
    %v1202 = vunpack.c.l.b16 %v1071
    %v1203 = vunpack.c.h.b16 %v1071
    %v1204 = vunpack.c.l.b16 %v1072
    %v1205 = vunpack.c.h.b16 %v1072
    %v1206 = vunpack.c.l.b16 %v1073
    %v1207 = vunpack.c.h.b16 %v1073
    %v1208 = vunpack.c.l.b16 %v1074
    %v1209 = vunpack.c.h.b16 %v1074
    %v1210 = vunpack.c.l.b16 %v1075
    %v1211 = vunpack.c.h.b16 %v1075
    %v1212 = vunpack.c.l.b16 %v1076
    %v1213 = vunpack.c.h.b16 %v1076
    %v1214 = vunpack.c.l.b16 %v1077
    %v1215 = vunpack.c.h.b16 %v1077
    %v1216 = vunpack.c.l.b16 %v1078
    %v1217 = vunpack.c.h.b16 %v1078
    %v1218 = vunpack.c.l.b16 %v1079
    %v1219 = vunpack.c.h.b16 %v1079
    %v1220 = vunpack.c.l.b16 %v1080
    %v1221 = vunpack.c.h.b16 %v1080
    %v1222 = vunpack.c.l.b16 %v1081
    %v1223 = vunpack.c.h.b16 %v1081
    %v1224 = vunpack.c.l.b16 %v1082
    %v1225 = vunpack.c.h.b16 %v1082
    %v1226 = vunpack.c.l.b16 %v1083
    %v1227 = vunpack.c.h.b16 %v1083
    %v1228 = vpack.c.b16 %v1134, %v1132
    %v1229 = vpack.c.b16 %v1135, %v1133
    %v1230 = vpack.c.b16 %v1138, %v1136
    %v1231 = vpack.c.b16 %v1139, %v1137
    %v1232 = vpack.c.b16 %v1142, %v1140
    %v1233 = vpack.c.b16 %v1143, %v1141
    %v1234 = vpack.c.b16 %v1146, %v1144
    %v1235 = vpack.c.b16 %v1147, %v1145
    %v1236 = vpack.c.b16 %v1150, %v1148
    %v1237 = vpack.c.b16 %v1151, %v1149
    %v1238 = vpack.c.b16 %v1154, %v1152
    %v1239 = vpack.c.b16 %v1155, %v1153
    %v1240 = vpack.c.b16 %v1158, %v1156
    %v1241 = vpack.c.b16 %v1159, %v1157
    %v1242 = vpack.c.b16 %v1162, %v1160
    %v1243 = vpack.c.b16 %v1163, %v1161
    %v1244 = vpack.c.b16 %v1166, %v1164
    %v1245 = vpack.c.b16 %v1167, %v1165
    %v1246 = vpack.c.b16 %v1170, %v1168
    %v1247 = vpack.c.b16 %v1171, %v1169
    %v1248 = vpack.c.b16 %v1174, %v1172
    %v1249 = vpack.c.b16 %v1175, %v1173
    %v1250 = vpack.c.b16 %v1178, %v1176
    %v1251 = vpack.c.b16 %v1179, %v1177
    %v1252 = vpack.c.b16 %v1182, %v1180
    %v1253 = vpack.c.b16 %v1183, %v1181
    %v1254 = vpack.c.b16 %v1186, %v1184
    %v1255 = vpack.c.b16 %v1187, %v1185
    %v1256 = vpack.c.b16 %v1190, %v1188
    %v1257 = vpack.c.b16 %v1191, %v1189
    %v1258 = vpack.c.b16 %v1194, %v1192
    %v1259 = vpack.c.b16 %v1195, %v1193
    %v1260 = vpack.c.b16 %v1198, %v1196
    %v1261 = vpack.c.b16 %v1199, %v1197
    %v1262 = vpack.c.b16 %v1202, %v1200
    %v1263 = vpack.c.b16 %v1203, %v1201
    %v1264 = vpack.c.b16 %v1206, %v1204
    %v1265 = vpack.c.b16 %v1207, %v1205
    %v1266 = vpack.c.b16 %v1210, %v1208
    %v1267 = vpack.c.b16 %v1211, %v1209
    %v1268 = vpack.c.b16 %v1214, %v1212
    %v1269 = vpack.c.b16 %v1215, %v1213
    %v1270 = vpack.c.b16 %v1218, %v1216
    %v1271 = vpack.c.b16 %v1219, %v1217
    %v1272 = vpack.c.b16 %v1222, %v1220
    %v1273 = vpack.c.b16 %v1223, %v1221
    %v1274 = vpack.c.b16 %v1226, %v1224
    %v1275 = vpack.c.b16 %v1227, %v1225
    %1324 = vmatpush.bf16.msra.mxu0 %v1242
    %1325 = vmatpush.bf16.msra.mxu0 %v1240
    %1326 = vmatpush.bf16.msra.mxu0 %v1238
    %1327 = vmatpush.bf16.msra.mxu0 %v1236
    %1328 = vmatpush.bf16.msra.mxu0 %v1234
    %1329 = vmatpush.bf16.msra.mxu0 %v1232
    %1330 = vmatpush.bf16.msra.mxu0 %v1230
    %1331 = vmatpush.bf16.msra.mxu0 %v1228
    %1332 = vmatmul.bf16.gmra.mxu0 %v1033
    %v1333 = vpop.f32.mrf.mxu0
    %v1334 = vadd.f32 0.0, %v1333
    %v1335 = vpop.f32.mrf.mxu0
    %v1336 = vadd.f32 0.0, %v1335
    %1337 = vdwg.mxu0
    %1338 = vmatpush.bf16.msra.mxu0 %v1258
    %1339 = vmatpush.bf16.msra.mxu0 %v1256
    %1340 = vmatpush.bf16.msra.mxu0 %v1254
    %1341 = vmatpush.bf16.msra.mxu0 %v1252
    %1342 = vmatpush.bf16.msra.mxu0 %v1250
    %1343 = vmatpush.bf16.msra.mxu0 %v1248
    %1344 = vmatpush.bf16.msra.mxu0 %v1246
    %1345 = vmatpush.bf16.msra.mxu0 %v1244
    %1346 = vmatmul.bf16.gmra.mxu0 %v1034
    %v1347 = vpop.f32.mrf.mxu0
    %v1348 = vadd.f32 %v1334, %v1347
    %v1349 = vpop.f32.mrf.mxu0
    %v1350 = vadd.f32 %v1336, %v1349
    %1351 = vdwg.mxu0
    %1352 = vmatpush.bf16.msra.mxu0 %v1274
    %1353 = vmatpush.bf16.msra.mxu0 %v1272
    %1354 = vmatpush.bf16.msra.mxu0 %v1270
    %1355 = vmatpush.bf16.msra.mxu0 %v1268
    %1356 = vmatpush.bf16.msra.mxu0 %v1266
    %1357 = vmatpush.bf16.msra.mxu0 %v1264
    %1358 = vmatpush.bf16.msra.mxu0 %v1262
    %1359 = vmatpush.bf16.msra.mxu0 %v1260
    %1360 = vmatmul.bf16.gmra.mxu0 %v1035
    %v1361 = vpop.f32.mrf.mxu0
    %v1362 = vadd.f32 %v1348, %v1361
    %v1363 = vpop.f32.mrf.mxu0
    %v1364 = vadd.f32 %v1350, %v1363
    %1365 = vdwg.mxu0
    %1366 = vmatpush.bf16.msra.mxu0 %v1243
    %1367 = vmatpush.bf16.msra.mxu0 %v1241
    %1368 = vmatpush.bf16.msra.mxu0 %v1239
    %1369 = vmatpush.bf16.msra.mxu0 %v1237
    %1370 = vmatpush.bf16.msra.mxu0 %v1235
    %1371 = vmatpush.bf16.msra.mxu0 %v1233
    %1372 = vmatpush.bf16.msra.mxu0 %v1231
    %1373 = vmatpush.bf16.msra.mxu0 %v1229
    %1374 = vmatmul.bf16.gmra.mxu0 %v1033
    %v1375 = vpop.f32.mrf.mxu0
    %v1376 = vadd.f32 0.0, %v1375
    %v1377 = vpop.f32.mrf.mxu0
    %v1378 = vadd.f32 0.0, %v1377
    %1379 = vdwg.mxu0
    %1380 = vmatpush.bf16.msra.mxu0 %v1259
    %1381 = vmatpush.bf16.msra.mxu0 %v1257
    %1382 = vmatpush.bf16.msra.mxu0 %v1255
    %1383 = vmatpush.bf16.msra.mxu0 %v1253
    %1384 = vmatpush.bf16.msra.mxu0 %v1251
    %1385 = vmatpush.bf16.msra.mxu0 %v1249
    %1386 = vmatpush.bf16.msra.mxu0 %v1247
    %1387 = vmatpush.bf16.msra.mxu0 %v1245
    %1388 = vmatmul.bf16.gmra.mxu0 %v1034
    %v1389 = vpop.f32.mrf.mxu0
    %v1390 = vadd.f32 %v1376, %v1389
    %v1391 = vpop.f32.mrf.mxu0
    %v1392 = vadd.f32 %v1378, %v1391
    %1393 = vdwg.mxu0
    %1394 = vmatpush.bf16.msra.mxu0 %v1275
    %1395 = vmatpush.bf16.msra.mxu0 %v1273
    %1396 = vmatpush.bf16.msra.mxu0 %v1271
    %1397 = vmatpush.bf16.msra.mxu0 %v1269
    %1398 = vmatpush.bf16.msra.mxu0 %v1267
    %1399 = vmatpush.bf16.msra.mxu0 %v1265
    %1400 = vmatpush.bf16.msra.mxu0 %v1263
    %1401 = vmatpush.bf16.msra.mxu0 %v1261
    %1402 = vmatmul.bf16.gmra.mxu0 %v1035
    %v1403 = vpop.f32.mrf.mxu0
    %v1404 = vadd.f32 %v1390, %v1403
    %v1405 = vpop.f32.mrf.mxu0
    %v1406 = vadd.f32 %v1392, %v1405
    %1407 = vdwg.mxu0
    %v1408 = vadd.f32 %v1029, %v1362
    %v1409 = vadd.f32 %v1030, %v1404
    %v1410 = vadd.f32 %v1031, %v1364
    %v1411 = vadd.f32 %v1032, %v1406
    %1412 = vst [vmem:[#allocation2] sm:$0xff] %v1408
    %1413 = vst [vmem:[#allocation2 + $0x8] sm:$0xff] %v1409
    %1414 = vst [vmem:[#allocation2 + $0x10] sm:$0xff] %v1410
    %1415 = vst [vmem:[#allocation2 + $0x18] sm:$0xff] %v1411
    // Predicated region
    $region38: #{tpu_custom_call.1} parent=1 // pred_check
      %p1416 = pneg %p81
    $region39: #{tpu_custom_call.1} parent=1 // pred_check_branch
      %1418 = sbr.rel (%p1416) target = $region41
    $region40: #{tpu_custom_call.1} parent=1 // pred_region
      %v1419 = vld [vmem:[#allocation2] sm:$0xff]
      %v1420 = vld [vmem:[#allocation2 + $0x8] sm:$0xff]
      %v1421 = vld [vmem:[#allocation2 + $0x10] sm:$0xff]
      %v1422 = vld [vmem:[#allocation2 + $0x18] sm:$0xff]
      %1423 = vst [vmem:[#allocation11] sm:$0xff] %v1419
      %1424 = vst [vmem:[#allocation11 + $0x8] sm:$0xff] %v1420
      %1425 = vst [vmem:[#allocation11 + $0x10] sm:$0xff] %v1421
      %1426 = vst [vmem:[#allocation11 + $0x18] sm:$0xff] %v1422
    $region41: #{tpu_custom_call.1} parent=1 // pred_fallthru
      _
    // Predicated region
    $region42: #{tpu_custom_call.1} parent=1 // pred_check
      _
    $region43: #{tpu_custom_call.1} parent=1 // pred_check_branch
      %1428 = sbr.rel (0) target = $region45
    $region44: #{tpu_custom_call.1} parent=1 // pred_region
      %1430 = vsyncadd [#allocation5], 0
      %s1431 = sshll.u32 [#allocation11], 4
      %s1432 = int_to_ptr.vmem [resolvable:$true] %s1431
      %s1433 = sshll.u32 %s4, 4
      %s1434 = int_to_ptr.hbm [resolvable:$true] %s1433
      %1439 = dma.vmem_to_hbm [thread:$0]  %s1432, 512, %s1434, [#allocation5], 256, 256, 16
    $region45: #{tpu_custom_call.1} parent=1 // pred_fallthru
      _
    // Predicated region
    $region46: #{tpu_custom_call.1} parent=1 // pred_check
      _
    $region47: #{tpu_custom_call.1} parent=1 // pred_check_branch
      %1441 = sbr.rel (0) target = $region49
    $region48: #{tpu_custom_call.1} parent=1 // pred_region
      %1443 = dma.done [#allocation5], 512
    $region49: #{tpu_custom_call.1} parent=1 // pred_fallthru
      _
    %1444 = vsyncpa [#allocation4], 1
    %1445 = vsyncpa [#allocation7], 1
    %1446 = vsyncpa [#allocation10], 1
    %1447 = vsyncpa [#allocation5], 1

</llo_original>
